<compile_context>
chip_gen: v7x
topology: tpu7x:2x2x1
jax: 0.10.0
libtpu: 0.0.40
codegen_flags: <defaults>
</compile_context>

<pallas_src>
import functools

import jax
import jax.numpy as jnp
import numpy as np
from jax.experimental import pallas as pl
from jax.experimental.pallas import tpu as pltpu

ALPHA = 0.7
GAMMA = 3.0


def _int_pow(x, gamma):
    """(1-pt)**gamma with integer-exponent specialization (gamma=3 -> x*x*x)."""
    g = float(gamma)
    if g == int(g) and 0 <= int(g) <= 8:
        n = int(g)
        if n == 0:
            return jnp.ones_like(x)
        r = x
        for _ in range(n - 1):
            r = r * x
        return r
    return jnp.power(x, g)


def _default_num_splits():
    """2 on devices with 2 TensorCores (v7x / megacore), else 1."""
    try:
        kind = (getattr(jax.devices()[0], "device_kind", "") or "").lower()
    except Exception:
        return 1
    for tag in ("v7", "v5p", "v4"):
        if tag in kind:
            return 2
    return 1


def _focal_loss_kernel(preds_ref, tgt_ref, out_ref, acc_ref, *,
                       num_inner, alpha, gamma):
    i = pl.program_id(1)   # sequential reduction over column tiles

    @pl.when(i == 0)
    def _():
        acc_ref[...] = jnp.zeros_like(acc_ref)

    # Samples dense on (sublane, lane); classes on the leading cross-vreg axis.
    logits = preds_ref[...].astype(jnp.float32)      # (C, 8, tile_cols)
    tgt = tgt_ref[...]                               # (8, tile_cols) int32
    num_classes = logits.shape[0]

    # Numerically-stable softmax pieces; class reductions are plain
    # cross-vreg VALU ops (no XLU).
    m = jnp.max(logits, axis=0, keepdims=True)       # (1, 8, tile_cols)
    shifted = logits - m                             # (C, 8, tile_cols)
    e = jnp.exp(shifted)                             # EUP
    sumexp = jnp.sum(e, axis=0)                      # (8, tile_cols)

    # Unrolled one-hot select of the target class (no iota needed; C is small
    # and static).  Reusing e avoids a second exp for pt.
    logit_t = jnp.zeros_like(sumexp)
    exp_t = jnp.zeros_like(sumexp)
    for cls in range(num_classes):
        sel = tgt == cls
        logit_t = logit_t + jnp.where(sel, shifted[cls], 0.0)
        exp_t = exp_t + jnp.where(sel, e[cls], 0.0)

    ce = jnp.log(sumexp) - logit_t                   # -log p_t
    pt = exp_t / sumexp                              # p_t, reuses exp(shifted)
    focal = alpha * _int_pow(1.0 - pt, gamma) * ce   # (8, tile_cols)

    # Padded samples carry sentinel target -1 -> zero contribution.
    # (cheap compare+select on already-loaded data; no column iota math)
    focal = jnp.where(tgt >= 0, focal, 0.0)

    # Dense (8, tile_cols) vector accumulation; full reduce once per split.
    acc_ref[...] += focal

    @pl.when(i == num_inner - 1)
    def _():
        out_ref[...] = jnp.reshape(jnp.sum(acc_ref[...]), (1, 1, 1))


def focal_loss_pallas(preds, targets, *, alpha=ALPHA, gamma=GAMMA,
                      vmem_block_bytes=2 << 20, num_splits=None):
    """preds: (N, C) float logits (f32 or bf16); targets: (N,) int class ids.

    Returns the scalar mean focal loss.  N does not need to be a multiple of
    anything: the wrapper pads and padded samples are masked in-kernel via a
    sentinel target of -1.
    """
    n, c = preds.shape
    itemsize = jnp.dtype(preds.dtype).itemsize

    if num_splits is None:
        num_splits = _default_num_splits()

    # 8 samples per column (they cover the sublane axis); columns cover lanes.
    cols_needed = pl.cdiv(n, 8)
    cols_rounded = pl.cdiv(cols_needed, 128) * 128

    # Biggest lane tile whose preds block fits the VMEM byte budget
    # (double-buffered; default ~2 MiB/block -> ~5-6 MiB total, well under the
    # scoped-VMEM defaults on v5e/v6e/v7x).
    tile_cols = (vmem_block_bytes // max(1, c * 8 * itemsize)) // 128 * 128
    tile_cols = int(max(128, min(tile_cols, cols_rounded)))

    num_tiles = int(pl.cdiv(cols_rounded, tile_cols))
    num_splits = int(max(1, min(int(num_splits), num_tiles)))
    num_inner = int(pl.cdiv(num_tiles, num_splits))
    cols_pad = num_splits * num_inner * tile_cols
    n_pad = 8 * cols_pad

    # Samples -> (sublane, lane); classes on the leading axis.
    # TODO(synk): drop this transpose+pad HBM pass if the producer can emit
    # (C, 8, cols) directly.
    preds_t = jnp.pad(jnp.transpose(preds, (1, 0)),
                      ((0, 0), (0, n_pad - n))).reshape(c, 8, cols_pad)
    tgt_t = jnp.pad(targets.astype(jnp.int32), (0, n_pad - n),
                    constant_values=-1).reshape(8, cols_pad)

    kernel = functools.partial(_focal_loss_kernel, num_inner=num_inner,
                               alpha=float(alpha), gamma=float(gamma))

    cost = pl.CostEstimate(
        flops=int((6 * c + 12) * n_pad),
        transcendentals=int((c + 2) * n_pad),
        bytes_accessed=int(c * n_pad * itemsize + 4 * n_pad + 4 * num_splits))

    partials = pl.pallas_call(
        kernel,
        out_shape=jax.ShapeDtypeStruct((num_splits, 1, 1), jnp.float32),
        grid_spec=pltpu.PrefetchScalarGridSpec(
            num_scalar_prefetch=0,
            grid=(num_splits, num_inner),
            in_specs=[
                pl.BlockSpec((c, 8, tile_cols),
                             lambda s, i: (0, 0, s * num_inner + i)),
                pl.BlockSpec((8, tile_cols),
                             lambda s, i: (0, s * num_inner + i)),
            ],
            out_specs=pl.BlockSpec((1, 1, 1), lambda s, i: (s, 0, 0)),
            scratch_shapes=[pltpu.VMEM((8, tile_cols), jnp.float32)],
        ),
        compiler_params=pltpu.CompilerParams(
            dimension_semantics=("parallel", "arbitrary")),
        cost_estimate=cost,
    )(preds_t, tgt_t)

    return jnp.sum(partials) / jnp.float32(n)


def focal_loss_ref(preds, targets, *, alpha=ALPHA, gamma=GAMMA):
    """Plain-JAX reference mirroring the PyTorch module (scalar alpha, mean)."""
    preds = preds.astype(jnp.float32)
    logp = jax.nn.log_softmax(preds, axis=1)
    probs = jnp.exp(logp)
    onehot = jax.nn.one_hot(targets, preds.shape[1], dtype=jnp.float32)
    pt = jnp.sum(probs * onehot, axis=1)
    ce = -jnp.sum(logp * onehot, axis=1)
    focal = alpha * (1.0 - pt) ** gamma * ce
    return jnp.mean(focal)


if __name__ == "__main__":
    key = jax.random.PRNGKey(0)
    k1, k2, k3, k4 = jax.random.split(key, 4)

    # Case 1: small N not a multiple of 8/128 (padding + sentinel mask path).
    N, C = 130, 8
    preds = jax.random.normal(k1, (N, C), dtype=jnp.float32) * 2.0
    targets = jax.random.randint(k2, (N,), 0, C, dtype=jnp.int32)
    loss = jax.block_until_ready(focal_loss_pallas(preds, targets))
    ref = jax.block_until_ready(focal_loss_ref(preds, targets))
    np.testing.assert_allclose(np.asarray(loss), np.asarray(ref),
                               rtol=1e-4, atol=1e-5)

    # Case 2: force multi-tile + 2-split streaming reduction with a tiny VMEM
    # budget, odd class count (exercises accumulator / split combination).
    N2, C2 = 5000, 5
    preds2 = jax.random.normal(k3, (N2, C2), dtype=jnp.float32)
    targets2 = jax.random.randint(k4, (N2,), 0, C2, dtype=jnp.int32)
    loss2 = jax.block_until_ready(
        focal_loss_pallas(preds2, targets2, vmem_block_bytes=8 * 1024,
                          num_splits=2))
    ref2 = jax.block_until_ready(focal_loss_ref(preds2, targets2))
    np.testing.assert_allclose(np.asarray(loss2), np.asarray(ref2),
                               rtol=1e-4, atol=1e-5)

    # Case 3: bf16 logits (halved HBM traffic); compare against the reference
    # evaluated on the same bf16-quantized logits.
    preds_bf16 = preds.astype(jnp.bfloat16)
    loss3 = jax.block_until_ready(focal_loss_pallas(preds_bf16, targets))
    ref3 = jax.block_until_ready(
        focal_loss_ref(preds_bf16.astype(jnp.float32), targets))
    np.testing.assert_allclose(np.asarray(loss3), np.asarray(ref3),
                               rtol=1e-3, atol=1e-4)

    print("KERNEL_OK")
</pallas_src>

<mosaic_0001>
module attributes {stable_mosaic.version = 11 : i64} {
  func.func @_focal_loss_kernel(%arg0: i32, %arg1: i32, %arg2: memref<8x8x128xf32, #tpu.memory_space<vmem>>, %arg3: memref<8x128xi32, #tpu.memory_space<vmem>>, %arg4: memref<1x1x1xf32, #tpu.memory_space<vmem>>, %arg5: memref<8x128xf32, #tpu.memory_space<vmem>>) attributes {dimension_semantics = [#tpu.dimension_semantics<parallel>, #tpu.dimension_semantics<arbitrary>], iteration_bounds = array<i64: 1, 1>, scalar_prefetch = 0 : i64, scratch_operands = 1 : i64, tpu.core_type = #tpu.core_type<tc>, window_params = [{transform_indices = @transform_0, window_bounds = array<i64: 8, 8, 128>}, {transform_indices = @transform_1, window_bounds = array<i64: 8, 128>}, {transform_indices = @transform_2, window_bounds = array<i64: 1, 1, 1>}]} {
    %c0_i32 = arith.constant 0 : i32
    %0 = arith.cmpi eq, %arg1, %c0_i32 : i32
    %1 = arith.extui %0 : i1 to i32
    %c0_i32_0 = arith.constant 0 : i32
    %2 = arith.cmpi ne, %1, %c0_i32_0 : i32
    scf.if %2 {
      %cst_35 = arith.constant 0.000000e+00 : f32
      %129 = vector.broadcast %cst_35 : f32 to vector<8x128xf32>
      %c0_36 = arith.constant 0 : index
      %c0_37 = arith.constant 0 : index
      %130 = vector.load %arg5[%c0_36, %c0_37] : memref<8x128xf32, #tpu.memory_space<vmem>>, vector<8x128xf32>
      tpu.vector_store %arg5[%c0_36, %c0_37], %129 {strides = array<i32>} : memref<8x128xf32, #tpu.memory_space<vmem>>, vector<8x128xf32>,
    } else {
    }
    %c0 = arith.constant 0 : index
    %c0_1 = arith.constant 0 : index
    %c0_2 = arith.constant 0 : index
    %3 = vector.load %arg2[%c0, %c0_1, %c0_2] : memref<8x8x128xf32, #tpu.memory_space<vmem>>, vector<8x8x128xf32>
    %c0_3 = arith.constant 0 : index
    %c0_4 = arith.constant 0 : index
    %4 = vector.load %arg3[%c0_3, %c0_4] : memref<8x128xi32, #tpu.memory_space<vmem>>, vector<8x128xi32>
    %cst = arith.constant dense<0xFF800000> : vector<8x128xf32>
    %5 = vector.multi_reduction <maximumf>, %3, %cst [0] : vector<8x8x128xf32> to vector<8x128xf32>
    %6 = vector.shape_cast %5 : vector<8x128xf32> to vector<1x8x128xf32>
    %7 = vector.broadcast %6 : vector<1x8x128xf32> to vector<8x8x128xf32>
    %8 = arith.subf %3, %7 : vector<8x8x128xf32>
    %9 = math.exp %8 : vector<8x8x128xf32>
    %cst_5 = arith.constant dense<0.000000e+00> : vector<8x128xf32>
    %10 = vector.multi_reduction <add>, %9, %cst_5 [0] : vector<8x8x128xf32> to vector<8x128xf32>
    %cst_6 = arith.constant 0.000000e+00 : f32
    %11 = vector.broadcast %cst_6 : f32 to vector<8x128xf32>
    %cst_7 = arith.constant 0.000000e+00 : f32
    %12 = vector.broadcast %cst_7 : f32 to vector<8x128xf32>
    %c0_i32_8 = arith.constant 0 : i32
    %13 = vector.broadcast %c0_i32_8 : i32 to vector<8x128xi32>
    %14 = arith.cmpi eq, %4, %13 : vector<8x128xi32>
    %15 = vector.extract_strided_slice %8 {offsets = [0, 0, 0], sizes = [1, 8, 128], strides = [1, 1, 1]} : vector<8x8x128xf32> to vector<1x8x128xf32>
    %16 = vector.shape_cast %15 : vector<1x8x128xf32> to vector<8x128xf32>
    %cst_9 = arith.constant 0.000000e+00 : f32
    %17 = vector.broadcast %cst_9 : f32 to vector<8x128xf32>
    %18 = arith.select %14, %16, %17 : vector<8x128xi1>, vector<8x128xf32>
    %19 = arith.addf %11, %18 : vector<8x128xf32>
    %20 = vector.extract_strided_slice %9 {offsets = [0, 0, 0], sizes = [1, 8, 128], strides = [1, 1, 1]} : vector<8x8x128xf32> to vector<1x8x128xf32>
    %21 = vector.shape_cast %20 : vector<1x8x128xf32> to vector<8x128xf32>
    %cst_10 = arith.constant 0.000000e+00 : f32
    %22 = vector.broadcast %cst_10 : f32 to vector<8x128xf32>
    %23 = arith.select %14, %21, %22 : vector<8x128xi1>, vector<8x128xf32>
    %24 = arith.addf %12, %23 : vector<8x128xf32>
    %c1_i32 = arith.constant 1 : i32
    %25 = vector.broadcast %c1_i32 : i32 to vector<8x128xi32>
    %26 = arith.cmpi eq, %4, %25 : vector<8x128xi32>
    %27 = vector.extract_strided_slice %8 {offsets = [1, 0, 0], sizes = [1, 8, 128], strides = [1, 1, 1]} : vector<8x8x128xf32> to vector<1x8x128xf32>
    %28 = vector.shape_cast %27 : vector<1x8x128xf32> to vector<8x128xf32>
    %cst_11 = arith.constant 0.000000e+00 : f32
    %29 = vector.broadcast %cst_11 : f32 to vector<8x128xf32>
    %30 = arith.select %26, %28, %29 : vector<8x128xi1>, vector<8x128xf32>
    %31 = arith.addf %19, %30 : vector<8x128xf32>
    %32 = vector.extract_strided_slice %9 {offsets = [1, 0, 0], sizes = [1, 8, 128], strides = [1, 1, 1]} : vector<8x8x128xf32> to vector<1x8x128xf32>
    %33 = vector.shape_cast %32 : vector<1x8x128xf32> to vector<8x128xf32>
    %cst_12 = arith.constant 0.000000e+00 : f32
    %34 = vector.broadcast %cst_12 : f32 to vector<8x128xf32>
    %35 = arith.select %26, %33, %34 : vector<8x128xi1>, vector<8x128xf32>
    %36 = arith.addf %24, %35 : vector<8x128xf32>
    %c2_i32 = arith.constant 2 : i32
    %37 = vector.broadcast %c2_i32 : i32 to vector<8x128xi32>
    %38 = arith.cmpi eq, %4, %37 : vector<8x128xi32>
    %39 = vector.extract_strided_slice %8 {offsets = [2, 0, 0], sizes = [1, 8, 128], strides = [1, 1, 1]} : vector<8x8x128xf32> to vector<1x8x128xf32>
    %40 = vector.shape_cast %39 : vector<1x8x128xf32> to vector<8x128xf32>
    %cst_13 = arith.constant 0.000000e+00 : f32
    %41 = vector.broadcast %cst_13 : f32 to vector<8x128xf32>
    %42 = arith.select %38, %40, %41 : vector<8x128xi1>, vector<8x128xf32>
    %43 = arith.addf %31, %42 : vector<8x128xf32>
    %44 = vector.extract_strided_slice %9 {offsets = [2, 0, 0], sizes = [1, 8, 128], strides = [1, 1, 1]} : vector<8x8x128xf32> to vector<1x8x128xf32>
    %45 = vector.shape_cast %44 : vector<1x8x128xf32> to vector<8x128xf32>
    %cst_14 = arith.constant 0.000000e+00 : f32
    %46 = vector.broadcast %cst_14 : f32 to vector<8x128xf32>
    %47 = arith.select %38, %45, %46 : vector<8x128xi1>, vector<8x128xf32>
    %48 = arith.addf %36, %47 : vector<8x128xf32>
    %c3_i32 = arith.constant 3 : i32
    %49 = vector.broadcast %c3_i32 : i32 to vector<8x128xi32>
    %50 = arith.cmpi eq, %4, %49 : vector<8x128xi32>
    %51 = vector.extract_strided_slice %8 {offsets = [3, 0, 0], sizes = [1, 8, 128], strides = [1, 1, 1]} : vector<8x8x128xf32> to vector<1x8x128xf32>
    %52 = vector.shape_cast %51 : vector<1x8x128xf32> to vector<8x128xf32>
    %cst_15 = arith.constant 0.000000e+00 : f32
    %53 = vector.broadcast %cst_15 : f32 to vector<8x128xf32>
    %54 = arith.select %50, %52, %53 : vector<8x128xi1>, vector<8x128xf32>
    %55 = arith.addf %43, %54 : vector<8x128xf32>
    %56 = vector.extract_strided_slice %9 {offsets = [3, 0, 0], sizes = [1, 8, 128], strides = [1, 1, 1]} : vector<8x8x128xf32> to vector<1x8x128xf32>
    %57 = vector.shape_cast %56 : vector<1x8x128xf32> to vector<8x128xf32>
    %cst_16 = arith.constant 0.000000e+00 : f32
    %58 = vector.broadcast %cst_16 : f32 to vector<8x128xf32>
    %59 = arith.select %50, %57, %58 : vector<8x128xi1>, vector<8x128xf32>
    %60 = arith.addf %48, %59 : vector<8x128xf32>
    %c4_i32 = arith.constant 4 : i32
    %61 = vector.broadcast %c4_i32 : i32 to vector<8x128xi32>
    %62 = arith.cmpi eq, %4, %61 : vector<8x128xi32>
    %63 = vector.extract_strided_slice %8 {offsets = [4, 0, 0], sizes = [1, 8, 128], strides = [1, 1, 1]} : vector<8x8x128xf32> to vector<1x8x128xf32>
    %64 = vector.shape_cast %63 : vector<1x8x128xf32> to vector<8x128xf32>
    %cst_17 = arith.constant 0.000000e+00 : f32
    %65 = vector.broadcast %cst_17 : f32 to vector<8x128xf32>
    %66 = arith.select %62, %64, %65 : vector<8x128xi1>, vector<8x128xf32>
    %67 = arith.addf %55, %66 : vector<8x128xf32>
    %68 = vector.extract_strided_slice %9 {offsets = [4, 0, 0], sizes = [1, 8, 128], strides = [1, 1, 1]} : vector<8x8x128xf32> to vector<1x8x128xf32>
    %69 = vector.shape_cast %68 : vector<1x8x128xf32> to vector<8x128xf32>
    %cst_18 = arith.constant 0.000000e+00 : f32
    %70 = vector.broadcast %cst_18 : f32 to vector<8x128xf32>
    %71 = arith.select %62, %69, %70 : vector<8x128xi1>, vector<8x128xf32>
    %72 = arith.addf %60, %71 : vector<8x128xf32>
    %c5_i32 = arith.constant 5 : i32
    %73 = vector.broadcast %c5_i32 : i32 to vector<8x128xi32>
    %74 = arith.cmpi eq, %4, %73 : vector<8x128xi32>
    %75 = vector.extract_strided_slice %8 {offsets = [5, 0, 0], sizes = [1, 8, 128], strides = [1, 1, 1]} : vector<8x8x128xf32> to vector<1x8x128xf32>
    %76 = vector.shape_cast %75 : vector<1x8x128xf32> to vector<8x128xf32>
    %cst_19 = arith.constant 0.000000e+00 : f32
    %77 = vector.broadcast %cst_19 : f32 to vector<8x128xf32>
    %78 = arith.select %74, %76, %77 : vector<8x128xi1>, vector<8x128xf32>
    %79 = arith.addf %67, %78 : vector<8x128xf32>
    %80 = vector.extract_strided_slice %9 {offsets = [5, 0, 0], sizes = [1, 8, 128], strides = [1, 1, 1]} : vector<8x8x128xf32> to vector<1x8x128xf32>
    %81 = vector.shape_cast %80 : vector<1x8x128xf32> to vector<8x128xf32>
    %cst_20 = arith.constant 0.000000e+00 : f32
    %82 = vector.broadcast %cst_20 : f32 to vector<8x128xf32>
    %83 = arith.select %74, %81, %82 : vector<8x128xi1>, vector<8x128xf32>
    %84 = arith.addf %72, %83 : vector<8x128xf32>
    %c6_i32 = arith.constant 6 : i32
    %85 = vector.broadcast %c6_i32 : i32 to vector<8x128xi32>
    %86 = arith.cmpi eq, %4, %85 : vector<8x128xi32>
    %87 = vector.extract_strided_slice %8 {offsets = [6, 0, 0], sizes = [1, 8, 128], strides = [1, 1, 1]} : vector<8x8x128xf32> to vector<1x8x128xf32>
    %88 = vector.shape_cast %87 : vector<1x8x128xf32> to vector<8x128xf32>
    %cst_21 = arith.constant 0.000000e+00 : f32
    %89 = vector.broadcast %cst_21 : f32 to vector<8x128xf32>
    %90 = arith.select %86, %88, %89 : vector<8x128xi1>, vector<8x128xf32>
    %91 = arith.addf %79, %90 : vector<8x128xf32>
    %92 = vector.extract_strided_slice %9 {offsets = [6, 0, 0], sizes = [1, 8, 128], strides = [1, 1, 1]} : vector<8x8x128xf32> to vector<1x8x128xf32>
    %93 = vector.shape_cast %92 : vector<1x8x128xf32> to vector<8x128xf32>
    %cst_22 = arith.constant 0.000000e+00 : f32
    %94 = vector.broadcast %cst_22 : f32 to vector<8x128xf32>
    %95 = arith.select %86, %93, %94 : vector<8x128xi1>, vector<8x128xf32>
    %96 = arith.addf %84, %95 : vector<8x128xf32>
    %c7_i32 = arith.constant 7 : i32
    %97 = vector.broadcast %c7_i32 : i32 to vector<8x128xi32>
    %98 = arith.cmpi eq, %4, %97 : vector<8x128xi32>
    %99 = vector.extract_strided_slice %8 {offsets = [7, 0, 0], sizes = [1, 8, 128], strides = [1, 1, 1]} : vector<8x8x128xf32> to vector<1x8x128xf32>
    %100 = vector.shape_cast %99 : vector<1x8x128xf32> to vector<8x128xf32>
    %cst_23 = arith.constant 0.000000e+00 : f32
    %101 = vector.broadcast %cst_23 : f32 to vector<8x128xf32>
    %102 = arith.select %98, %100, %101 : vector<8x128xi1>, vector<8x128xf32>
    %103 = arith.addf %91, %102 : vector<8x128xf32>
    %104 = vector.extract_strided_slice %9 {offsets = [7, 0, 0], sizes = [1, 8, 128], strides = [1, 1, 1]} : vector<8x8x128xf32> to vector<1x8x128xf32>
    %105 = vector.shape_cast %104 : vector<1x8x128xf32> to vector<8x128xf32>
    %cst_24 = arith.constant 0.000000e+00 : f32
    %106 = vector.broadcast %cst_24 : f32 to vector<8x128xf32>
    %107 = arith.select %98, %105, %106 : vector<8x128xi1>, vector<8x128xf32>
    %108 = arith.addf %96, %107 : vector<8x128xf32>
    %109 = math.log %10 : vector<8x128xf32>
    %110 = arith.subf %109, %103 : vector<8x128xf32>
    %111 = arith.divf %108, %10 : vector<8x128xf32>
    %cst_25 = arith.constant 1.000000e+00 : f32
    %112 = vector.broadcast %cst_25 : f32 to vector<8x128xf32>
    %113 = arith.subf %112, %111 : vector<8x128xf32>
    %114 = arith.mulf %113, %113 : vector<8x128xf32>
    %115 = arith.mulf %114, %113 : vector<8x128xf32>
    %cst_26 = arith.constant 0.699999988 : f32
    %116 = vector.broadcast %cst_26 : f32 to vector<8x128xf32>
    %117 = arith.mulf %116, %115 : vector<8x128xf32>
    %118 = arith.mulf %117, %110 : vector<8x128xf32>
    %c0_i32_27 = arith.constant 0 : i32
    %119 = vector.broadcast %c0_i32_27 : i32 to vector<8x128xi32>
    %120 = arith.cmpi sge, %4, %119 : vector<8x128xi32>
    %cst_28 = arith.constant 0.000000e+00 : f32
    %121 = vector.broadcast %cst_28 : f32 to vector<8x128xf32>
    %122 = arith.select %120, %118, %121 : vector<8x128xi1>, vector<8x128xf32>
    %c0_29 = arith.constant 0 : index
    %c0_30 = arith.constant 0 : index
    %123 = vector.load %arg5[%c0_29, %c0_30] : memref<8x128xf32, #tpu.memory_space<vmem>>, vector<8x128xf32>
    %124 = arith.addf %123, %122 : vector<8x128xf32>
    %c0_31 = arith.constant 0 : index
    %c0_32 = arith.constant 0 : index
    %125 = vector.load %arg5[%c0_31, %c0_32] : memref<8x128xf32, #tpu.memory_space<vmem>>, vector<8x128xf32>
    tpu.vector_store %arg5[%c0_31, %c0_32], %124 {strides = array<i32>} : memref<8x128xf32, #tpu.memory_space<vmem>>, vector<8x128xf32>,
    %c0_i32_33 = arith.constant 0 : i32
    %126 = arith.cmpi eq, %arg1, %c0_i32_33 : i32
    %127 = arith.extui %126 : i1 to i32
    %c0_i32_34 = arith.constant 0 : i32
    %128 = arith.cmpi ne, %127, %c0_i32_34 : i32
    scf.if %128 {
      %c0_35 = arith.constant 0 : index
      %c0_36 = arith.constant 0 : index
      %129 = vector.load %arg5[%c0_35, %c0_36] : memref<8x128xf32, #tpu.memory_space<vmem>>, vector<8x128xf32>
      %130 = vector.shape_cast %129 : vector<8x128xf32> to vector<1x8x128xf32>
      %cst_37 = arith.constant dense<0.000000e+00> : vector<1xf32>
      %131 = vector.multi_reduction <add>, %130, %cst_37 [1, 2] : vector<1x8x128xf32> to vector<1xf32>
      %132 = vector.shape_cast %131 : vector<1xf32> to vector<1x1x1xf32>
      %133 = vector.extract %132[0, 0, 0] : f32 from vector<1x1x1xf32>
      %134 = vector.broadcast %133 : f32 to vector<1x1x1xf32>
      %c0_38 = arith.constant 0 : index
      %c0_39 = arith.constant 0 : index
      %c0_40 = arith.constant 0 : index
      %135 = vector.load %arg4[%c0_38, %c0_39, %c0_40] : memref<1x1x1xf32, #tpu.memory_space<vmem>>, vector<1x1x1xf32>
      tpu.vector_store %arg4[%c0_38, %c0_39, %c0_40], %134 {strides = array<i32>} : memref<1x1x1xf32, #tpu.memory_space<vmem>>, vector<1x1x1xf32>,
    } else {
    }
    return
  }
  func.func @transform_0(%arg0: i32, %arg1: i32) -> (i32, i32, i32) {
    %c1_i32 = arith.constant 1 : i32
    %0 = arith.muli %arg0, %c1_i32 : i32
    %1 = arith.addi %0, %arg1 : i32
    %c0_i32 = arith.constant 0 : i32
    %c0_i32_0 = arith.constant 0 : i32
    %c0_i32_1 = arith.constant 0 : i32
    return %c0_i32, %c0_i32_0, %1 : i32, i32, i32
  }
  func.func @transform_1(%arg0: i32, %arg1: i32) -> (i32, i32) {
    %c1_i32 = arith.constant 1 : i32
    %0 = arith.muli %arg0, %c1_i32 : i32
    %1 = arith.addi %0, %arg1 : i32
    %c0_i32 = arith.constant 0 : i32
    %c0_i32_0 = arith.constant 0 : i32
    return %c0_i32, %1 : i32, i32
  }
  func.func @transform_2(%arg0: i32, %arg1: i32) -> (i32, i32, i32) {
    %c0_i32 = arith.constant 0 : i32
    %c0_i32_0 = arith.constant 0 : i32
    %c0_i32_1 = arith.constant 0 : i32
    return %arg0, %c0_i32, %c0_i32_0 : i32, i32, i32
  }
}

</mosaic_0001>

<llo_original>
// kernel: tpu_custom_call.1
$region0: #{tpu_custom_call.1}
  #allocation0 [shape = 'u32[]', space=smem, size = 0x4, offset = 0x4, fixed_abs, tag = 'smem constant byte address 0x4 - core index']
  #allocation1 [shape = 'u32[144,128]{1,0:T(1,128)}', space=vmem, size = 0x12000, scoped, tag = 'internal scratch']
  #allocation2 [shape = 'f32[8,128]{1,0:T(8,128)}', space=vmem, size = 0x1000, scoped, tag = 'scratch operand']
  %s0 = inlined_call_operand.hbm [shape: f32[8,8,128], index: 0, kind: input, shape index: {}]
  %s1 = inlined_call_operand.hbm [shape: s32[8,128], index: 1, kind: input, shape index: {}]
  %s2 = inlined_call_operand.hbm [shape: f32[1,1,1], index: 2, kind: output, shape index: {}]
  %s3 = sld [smem:[#allocation0]]
  $region34: #{tpu_custom_call.1} parent=0
    _
  %s5 = ssub.s32 1, %s3
  %s6 = scalar_select 0, %s5, %s3
  $region1: #{tpu_custom_call.1} parent=0
    #allocation3 [shape = 'u8[32768]{0}', space=vmem, size = 0x8000, scoped, tag = 'input window, operand 0, single buffered']
    #allocation4 [shape = 's32[1]{0}', space=sflag, size = 0x4, scoped, tag = 'scoped memory for tpu_custom_call.1']
    #allocation5 [shape = 's32[1]{0}', space=sflag, size = 0x4, scoped, tag = 'scoped memory for tpu_custom_call.1']
    #allocation6 [shape = 'u8[4096]{0}', space=vmem, size = 0x1000, scoped, tag = 'input window, operand 1, single buffered']
    #allocation7 [shape = 's32[1]{0}', space=sflag, size = 0x4, scoped, tag = 'scoped memory for tpu_custom_call.1']
    #allocation8 [shape = 'u8[512]{0}', space=vmem, size = 0x400, scoped, tag = 'output window, operand 0, single buffered']
    %7 = vsyncpa [#allocation4], 0
    %8 = vsyncpa [#allocation7], 0
    %9 = vsyncpa [#allocation5], 0
    // Predicated region
    $region2: #{tpu_custom_call.1} parent=1 // pred_check
      _
    $region3: #{tpu_custom_call.1} parent=1 // pred_check_branch
      %11 = sbr.rel (0) target = $region5
    $region4: #{tpu_custom_call.1} parent=1 // pred_region
      %s12 = sadd.s32 0, 0
      %s14 = ssub.s32 1024, 1024
      %15 = vsyncadd [#allocation4], %s14
      %s16 = smul.addr %s12, 128
      %s17 = scalar_lea.hbm %s0, %s16
      %s18 = sshll.u32 [#allocation3], 4
      %s19 = int_to_ptr.vmem [resolvable:$true] %s18
      %24 = dma.hbm_to_vmem [thread:$0]  %s17, 1024, %s19, [#allocation4], 128, 128, 8
    $region5: #{tpu_custom_call.1} parent=1 // pred_fallthru
      _
    // Predicated region
    $region6: #{tpu_custom_call.1} parent=1 // pred_check
      _
    $region7: #{tpu_custom_call.1} parent=1 // pred_check_branch
      %26 = sbr.rel (0) target = $region9
    $region8: #{tpu_custom_call.1} parent=1 // pred_region
      %s27 = sadd.s32 0, 0
      %s29 = ssub.s32 128, 128
      %30 = vsyncadd [#allocation7], %s29
      %s31 = smul.addr %s27, 128
      %s32 = scalar_lea.hbm %s1, %s31
      %s34 = sshll.u32 [#allocation6], 4
      %s35 = int_to_ptr.vmem [resolvable:$true] %s34
      %37 = dma.hbm_to_vmem [thread:$0]  %s32, 128, %s35, [#allocation7]
    $region9: #{tpu_custom_call.1} parent=1 // pred_fallthru
      _
    // Predicated region
    $region10: #{tpu_custom_call.1} parent=1 // pred_check
      _
    $region11: #{tpu_custom_call.1} parent=1 // pred_check_branch
      %39 = sbr.rel (0) target = $region13
    $region12: #{tpu_custom_call.1} parent=1 // pred_region
      %40 = dma.done [#allocation4], 1024
    $region13: #{tpu_custom_call.1} parent=1 // pred_fallthru
      _
    // Predicated region
    $region14: #{tpu_custom_call.1} parent=1 // pred_check
      _
    $region15: #{tpu_custom_call.1} parent=1 // pred_check_branch
      %42 = sbr.rel (0) target = $region17
    $region16: #{tpu_custom_call.1} parent=1 // pred_region
      %43 = dma.done [#allocation7], 128
    $region17: #{tpu_custom_call.1} parent=1 // pred_fallthru
      _
    %s44 = sadd.s32 0, 0
    %s45 = sadd.s32 0, 0
    %p46 = scmp.eq.s32.totalorder 0, 0
    // Predicated region
    $region18: #{tpu_custom_call.1} parent=1 // pred_check
      %p47 = pneg %p46
    $region19: #{tpu_custom_call.1} parent=1 // pred_check_branch
      %49 = sbr.rel (%p47) target = $region21
    $region20: #{tpu_custom_call.1} parent=1 // pred_region
      %50 = vst [vmem:[#allocation2] sm:$0xff] 0.0
    $region21: #{tpu_custom_call.1} parent=1 // pred_fallthru
      _
    %v51 = vld [vmem:[#allocation3] sm:$0xff]
    %v52 = vld [vmem:[#allocation3 + $0x8] sm:$0xff]
    %v53 = vld [vmem:[#allocation3 + $0x10] sm:$0xff]
    %v54 = vld [vmem:[#allocation3 + $0x18] sm:$0xff]
    %v55 = vld [vmem:[#allocation3 + $0x20] sm:$0xff]
    %v56 = vld [vmem:[#allocation3 + $0x28] sm:$0xff]
    %v57 = vld [vmem:[#allocation3 + $0x30] sm:$0xff]
    %v58 = vld [vmem:[#allocation3 + $0x38] sm:$0xff]
    %v59 = vld [vmem:[#allocation6] sm:$0xff]
    %v60 = vmax.f32 %v51, %v55
    %v61 = vmax.f32 %v52, %v56
    %v62 = vmax.f32 %v53, %v57
    %v63 = vmax.f32 %v54, %v58
    %v64 = vmax.f32 %v60, %v61
    %v65 = vmax.f32 %v62, %v63
    %v66 = vmax.f32 %v64, %v65
    %v67 = vsub.f32 %v51, %v66
    %v68 = vsub.f32 %v52, %v66
    %v69 = vsub.f32 %v53, %v66
    %v70 = vsub.f32 %v54, %v66
    %v71 = vsub.f32 %v55, %v66
    %v72 = vsub.f32 %v56, %v66
    %v73 = vsub.f32 %v57, %v66
    %v74 = vsub.f32 %v58, %v66
    %v75 = vmul.f32 %v67, 1.442695
    %v76 = vpow.pop %v75
    %v77 = vmul.f32 %v68, 1.442695
    %v78 = vpow.pop %v77
    %v79 = vmul.f32 %v69, 1.442695
    %v80 = vpow.pop %v79
    %v81 = vmul.f32 %v70, 1.442695
    %v82 = vpow.pop %v81
    %v83 = vmul.f32 %v71, 1.442695
    %v84 = vpow.pop %v83
    %v85 = vmul.f32 %v72, 1.442695
    %v86 = vpow.pop %v85
    %v87 = vmul.f32 %v73, 1.442695
    %v88 = vpow.pop %v87
    %v89 = vmul.f32 %v74, 1.442695
    %v90 = vpow.pop %v89
    %v91 = vadd.f32 %v76, %v78
    %v92 = vadd.f32 %v91, %v80
    %v93 = vadd.f32 %v92, %v82
    %v94 = vadd.f32 %v93, %v84
    %v95 = vadd.f32 %v94, %v86
    %v96 = vadd.f32 %v95, %v88
    %v97 = vadd.f32 %v96, %v90
    %vm98 = vcmp.eq.s32.totalorder %v59, 0
    %v99 = vsel %vm98, %v67, 0.0
    %v100 = vadd.f32 %v99, 0.0
    %v101 = vsel %vm98, %v76, 0.0
    %v102 = vadd.f32 %v101, 0.0
    %vm103 = vcmp.eq.s32.totalorder %v59, 1
    %v104 = vsel %vm103, %v68, 0.0
    %v105 = vadd.f32 %v100, %v104
    %v106 = vsel %vm103, %v78, 0.0
    %v107 = vadd.f32 %v102, %v106
    %vm108 = vcmp.eq.s32.totalorder %v59, 2
    %v109 = vsel %vm108, %v69, 0.0
    %v110 = vadd.f32 %v105, %v109
    %v111 = vsel %vm108, %v80, 0.0
    %v112 = vadd.f32 %v107, %v111
    %vm113 = vcmp.eq.s32.totalorder %v59, 3
    %v114 = vsel %vm113, %v70, 0.0
    %v115 = vadd.f32 %v110, %v114
    %v116 = vsel %vm113, %v82, 0.0
    %v117 = vadd.f32 %v112, %v116
    %vm118 = vcmp.eq.s32.totalorder %v59, 4
    %v119 = vsel %vm118, %v71, 0.0
    %v120 = vadd.f32 %v115, %v119
    %v121 = vsel %vm118, %v84, 0.0
    %v122 = vadd.f32 %v117, %v121
    %vm123 = vcmp.eq.s32.totalorder %v59, 5
    %v124 = vsel %vm123, %v72, 0.0
    %v125 = vadd.f32 %v120, %v124
    %v126 = vsel %vm123, %v86, 0.0
    %v127 = vadd.f32 %v122, %v126
    %vm128 = vcmp.eq.s32.totalorder %v59, 6
    %v129 = vsel %vm128, %v73, 0.0
    %v130 = vadd.f32 %v125, %v129
    %v131 = vsel %vm128, %v88, 0.0
    %v132 = vadd.f32 %v127, %v131
    %vm133 = vcmp.eq.s32.totalorder %v59, 7
    %v134 = vsel %vm133, %v74, 0.0
    %v135 = vadd.f32 %v130, %v134
    %v136 = vsel %vm133, %v90, 0.0
    %v137 = vadd.f32 %v132, %v136
    %v138 = vlog2.pop %v97
    %v139 = vmul.f32 %v138, 0.6931472
    %v140 = vsub.f32 %v139, %v135
    %v141 = vrcp.pop %v97
    %v142 = vmul.f32 %v137, %v141
    %v143 = vsub.f32 1.0, %v142
    %v144 = vmul.f32 %v143, %v143
    %v145 = vmul.f32 %v144, %v143
    %v146 = vmul.f32 %v145, 0.7
    %v147 = vmul.f32 %v146, %v140
    %vm148 = vcmp.ge.s32.totalorder %v59, 0
    %v149 = vsel %vm148, %v147, 0.0
    %v150 = vld [vmem:[#allocation2] sm:$0xff]
    %v151 = vadd.f32 %v150, %v149
    %152 = vst [vmem:[#allocation2] sm:$0xff] %v151
    // Predicated region
    $region22: #{tpu_custom_call.1} parent=1 // pred_check
      %p153 = pneg %p46
    $region23: #{tpu_custom_call.1} parent=1 // pred_check_branch
      %155 = sbr.rel (%p153) target = $region25
    $region24: #{tpu_custom_call.1} parent=1 // pred_region
      %v156 = vld [vmem:[#allocation2] sm:$0xff]
      %157 = vadd.xlane.f32.xlu0 %v156
      %v158 = vpop.xlane.xlu0 %157
      %v159 = vrot.slane %v158, 4
      %v160 = vadd.f32 %v158, %v159
      %v161 = vrot.slane %v160, 2
      %v162 = vadd.f32 %v160, %v161
      %v163 = vrot.slane %v162, 1
      %v164 = vadd.f32 %v162, %v163
      %s165 = vtos %v164
      %v166 = vstv %s165
      %vm167 = vcmask 0
      %168 = vst.msk [vmem:[#allocation8] sm:$0x1] %vm167, %v166
    $region25: #{tpu_custom_call.1} parent=1 // pred_fallthru
      _
    // Predicated region
    $region26: #{tpu_custom_call.1} parent=1 // pred_check
      _
    $region27: #{tpu_custom_call.1} parent=1 // pred_check_branch
      %170 = sbr.rel (0) target = $region29
    $region28: #{tpu_custom_call.1} parent=1 // pred_region
      %s172 = ssub.s32 16, 16
      %173 = vsyncadd [#allocation5], %s172
      %s175 = sshll.u32 [#allocation8], 4
      %s176 = int_to_ptr.vmem [resolvable:$true] %s175
      %178 = dma.vmem_to_hbm [thread:$0]  %s176, 16, %s2, [#allocation5]
    $region29: #{tpu_custom_call.1} parent=1 // pred_fallthru
      _
    // Predicated region
    $region30: #{tpu_custom_call.1} parent=1 // pred_check
      _
    $region31: #{tpu_custom_call.1} parent=1 // pred_check_branch
      %180 = sbr.rel (0) target = $region33
    $region32: #{tpu_custom_call.1} parent=1 // pred_region
      %181 = dma.done [#allocation5], 16
    $region33: #{tpu_custom_call.1} parent=1 // pred_fallthru
      _
    %182 = vsyncpa [#allocation4], 1
    %183 = vsyncpa [#allocation7], 1
    %184 = vsyncpa [#allocation5], 1

</llo_original>
